<compile_context>
chip_gen: v7x
topology: tpu7x:2x2x1
jax: 0.10.0
libtpu: 0.0.40
codegen_flags: <defaults>
</compile_context>

<pallas_src>
import functools
import math

import jax
import jax.numpy as jnp
from jax import lax
from jax.experimental import pallas as pl
from jax.experimental.pallas import tpu as pltpu


def encoder_kernel(xcol_ref, mask_ref, pool_ref,
                   w1_ref, b1_ref, w2_ref, b2_ref,
                   w3_ref, b3_ref, w4_ref, b4_ref,
                   o_ref, h1p_ref, *, c1):
    # xcol_ref : (R, 5*Cin)  R = bblk*P, conv1 im2col rows (built in wrapper)
    # mask_ref : (R, 1)      1.0 where flat row r has r % P < T, else 0.0
    # pool_ref : (bblk, R)   mean-pool matrix (1/T at element b's valid rows)
    # w1_ref   : (5*Cin, C1), b1_ref (1, C1)      conv1, im2col layout
    # w2_ref   : (5*C1, C2),  b2_ref (1, C2)      conv2, im2col layout
    # w3_ref   : (C2, H), b3_ref (1, H)           linear1 (pre-transposed)
    # w4_ref   : (H, H),  b4_ref (1, H)           linear2 (pre-transposed)
    # o_ref    : (bblk, H)   L2-normalized projections
    # h1p_ref  : VMEM scratch (R+16, C1): rows [8, 8+R) hold masked conv1
    #            activations; 8-row zero borders supply out-of-range taps.
    R = xcol_ref.shape[0]

    # ---- Conv1d(3->64, k=5, pad=2) + ReLU: one (R,15)@(15,C1) matmul -------
    h1 = jnp.maximum(
        jnp.dot(xcol_ref[...], w1_ref[...],
                preferred_element_type=jnp.float32) + b1_ref[...], 0.0)
    # Zero rows whose window crossed an element boundary (r % P >= T); once in
    # the scratch they also act as conv2's per-element zero padding.
    h1 = h1 * mask_ref[...]

    # ---- Stage padded conv1 activations in VMEM ----------------------------
    zb = jnp.zeros((8, c1), jnp.float32)
    h1p_ref[pl.ds(0, 8), :] = zb
    h1p_ref[pl.ds(8, R), :] = h1
    h1p_ref[pl.ds(8 + R, 8), :] = zb

    # ---- Conv1d(64->128, k=5, pad=2) + ReLU: 5 accumulated matmuls ---------
    # Shifted views come from the scratch (vld path), no register sublane
    # shifts or 320-lane concats.
    acc = jnp.dot(h1p_ref[pl.ds(6, R), :], w2_ref[pl.ds(0, c1), :],
                  preferred_element_type=jnp.float32)
    for k in range(1, 5):
        acc = acc + jnp.dot(h1p_ref[pl.ds(6 + k, R), :],
                            w2_ref[pl.ds(k * c1, c1), :],
                            preferred_element_type=jnp.float32)
    h2 = jnp.maximum(acc + b2_ref[...], 0.0)                       # (R, C2)

    # ---- AdaptiveAvgPool1d(1) on the MXU: (bblk, R) @ (R, C2) --------------
    feat = jnp.dot(pool_ref[...], h2, preferred_element_type=jnp.float32)

    # ---- Projector: Linear + ReLU + Linear ---------------------------------
    p1 = jnp.maximum(
        jnp.dot(feat, w3_ref[...], preferred_element_type=jnp.float32)
        + b3_ref[...], 0.0)
    p2 = (jnp.dot(p1, w4_ref[...], preferred_element_type=jnp.float32)
          + b4_ref[...])                                            # (bblk, H)

    # ---- F.normalize(dim=1): x * rsqrt(max(sum x^2, eps^2)) ----------------
    ss = jnp.sum(p2 * p2, axis=1, keepdims=True)
    o_ref[...] = (p2 * lax.rsqrt(jnp.maximum(ss, 1e-24))).astype(o_ref.dtype)


def _choose_bblk(B, P, block_b):
    """Pick the per-step batch block.

    Multi-step grids need bblk % 8 == 0 (aligned (bblk,H) / (bblk*P,.) blocks).
    A single-step grid only needs (bblk*P) % 8 == 0 (blocks == full arrays).
    """
    if B > block_b:                        # large batch: biggest aligned block
        return max((block_b // 8) * 8, 8)
    if B >= 16:                            # split so v7x's 2 TCs both get work
        return pl.cdiv(B, 16) * 8
    g = 8 // math.gcd(P, 8)                # tiny batch: one step, minimal pad
    return pl.cdiv(B, g) * g


def time_series_encoder(x, params, *, block_b=128):
    """x: (B, T, 3) float32 (channel-last). Returns (B, 64) L2-normalized."""
    B, T, C = x.shape
    w1col, b1, w2col, b2, w3t, b3, w4t, b4 = params
    C1 = w1col.shape[1]
    C2 = w2col.shape[1]
    H = w4t.shape[1]
    P = T + 4                               # 2 + T + 2 per-element time padding

    bblk = _choose_bblk(B, P, block_b)
    Bpad = pl.cdiv(B, bblk) * bblk
    grid = (Bpad // bblk,)
    R = bblk * P                            # rows per grid step (sublane-aligned)

    # --- wrapper-side glue: per-element zero padding + conv1 im2col ---------
    xp = jnp.pad(x.astype(jnp.float32), ((0, Bpad - B), (2, 2), (0, 0)))
    xflat = xp.reshape(Bpad * P, C)
    xext = jnp.pad(xflat, ((0, 4), (0, 0)))                  # tail taps
    xcol = jnp.concatenate([xext[k:k + Bpad * P, :] for k in range(5)], axis=1)

    # Grid-invariant row-validity mask and mean-pool matrix (same for every
    # block since blocks contain whole elements) -> constant index maps.
    rows = jnp.arange(R, dtype=jnp.int32)
    valid = (rows % P) < T
    mask = valid.astype(jnp.float32).reshape(R, 1)
    elem = rows // P
    pool = jnp.where(valid[None, :]
                     & (elem[None, :] == jnp.arange(bblk, dtype=jnp.int32)[:, None]),
                     1.0 / T, 0.0).astype(jnp.float32)        # (bblk, R)

    flops_per_step = (2 * R * (5 * C) * C1 + 2 * R * (5 * C1) * C2
                      + 2 * bblk * R * C2 + 2 * bblk * C2 * H + 2 * bblk * H * H)
    bytes_accessed = 4 * (xcol.size + mask.size + pool.size
                          + sum(int(a.size) for a in params) + Bpad * H)

    kernel = functools.partial(encoder_kernel, c1=C1)
    const = lambda b: (0, 0)

    out = pl.pallas_call(
        kernel,
        out_shape=jax.ShapeDtypeStruct((Bpad, H), jnp.float32),
        grid=grid,
        in_specs=[
            pl.BlockSpec((R, 5 * C), lambda b: (b, 0)),
            pl.BlockSpec(mask.shape, const),
            pl.BlockSpec(pool.shape, const),
            pl.BlockSpec(w1col.shape, const),
            pl.BlockSpec(b1.shape, const),
            pl.BlockSpec(w2col.shape, const),
            pl.BlockSpec(b2.shape, const),
            pl.BlockSpec(w3t.shape, const),
            pl.BlockSpec(b3.shape, const),
            pl.BlockSpec(w4t.shape, const),
            pl.BlockSpec(b4.shape, const),
        ],
        out_specs=pl.BlockSpec((bblk, H), lambda b: (b, 0)),
        scratch_shapes=[pltpu.VMEM((R + 16, C1), jnp.float32)],
        compiler_params=pltpu.CompilerParams(
            dimension_semantics=("parallel",),
            vmem_limit_bytes=48 * 1024 * 1024),
        cost_estimate=pl.CostEstimate(
            flops=int(grid[0] * flops_per_step),
            transcendentals=int(Bpad),
            bytes_accessed=int(bytes_accessed)),
    )(xcol, mask, pool, w1col, b1, w2col, b2, w3t, b3, w4t, b4)

    return out[:B]


def reference(x, w1, b1, w2, b2, w3, b3, w4, b4):
    """Pure-JAX reference mirroring the PyTorch forward exactly."""
    xc = jnp.transpose(x, (0, 2, 1))                          # (B, 3, T)
    dn = ('NCH', 'OIH', 'NCH')
    h = lax.conv_general_dilated(xc, w1, (1,), [(2, 2)],
                                 dimension_numbers=dn) + b1[None, :, None]
    h = jnp.maximum(h, 0.0)
    h = lax.conv_general_dilated(h, w2, (1,), [(2, 2)],
                                 dimension_numbers=dn) + b2[None, :, None]
    h = jnp.maximum(h, 0.0)
    feat = jnp.mean(h, axis=2)                                # (B, 128)
    p = jnp.maximum(feat @ w3.T + b3, 0.0) @ w4.T + b4        # (B, 64)
    n = jnp.sqrt(jnp.sum(p * p, axis=1, keepdims=True))
    return p / jnp.maximum(n, 1e-12)


if __name__ == "__main__":
    key = jax.random.PRNGKey(0)
    B, T, C = 2, 8, 3
    ks = jax.random.split(key, 9)

    x = jax.random.normal(ks[0], (B, T, C), jnp.float32)

    # Deterministic synthetic parameters (shapes from the nn.Module __init__).
    w1 = jax.random.normal(ks[1], (64, 3, 5), jnp.float32) * 0.20
    b1 = jax.random.normal(ks[2], (64,), jnp.float32) * 0.10
    w2 = jax.random.normal(ks[3], (128, 64, 5), jnp.float32) * 0.05
    b2 = jax.random.normal(ks[4], (128,), jnp.float32) * 0.10
    w3 = jax.random.normal(ks[5], (64, 128), jnp.float32) * 0.08
    b3 = jax.random.normal(ks[6], (64,), jnp.float32) * 0.10
    w4 = jax.random.normal(ks[7], (64, 64), jnp.float32) * 0.10
    b4 = jax.random.normal(ks[8], (64,), jnp.float32) * 0.10

    # Kernel-layout parameters: conv weights in im2col layout
    # w_col[k*Cin + c, o] = w[o, c, k]; linear weights pre-transposed;
    # biases as (1, N) rows.
    params = (
        jnp.transpose(w1, (2, 1, 0)).reshape(5 * 3, 64), b1.reshape(1, -1),
        jnp.transpose(w2, (2, 1, 0)).reshape(5 * 64, 128), b2.reshape(1, -1),
        w3.T, b3.reshape(1, -1),
        w4.T, b4.reshape(1, -1),
    )

    out = jax.block_until_ready(time_series_encoder(x, params))
    ref = jax.block_until_ready(reference(x, w1, b1, w2, b2, w3, b3, w4, b4))

    assert out.shape == (B, 64)
    assert jnp.allclose(out, ref, atol=1e-4, rtol=1e-4), (out, ref)
    print("KERNEL_OK")
</pallas_src>

<mosaic_0001>
module attributes {stable_mosaic.version = 11 : i64} {
  func.func @encoder_kernel(%arg0: i32, %arg1: memref<24x15xf32, #tpu.memory_space<vmem>>, %arg2: memref<24x1xf32, #tpu.memory_space<vmem>>, %arg3: memref<2x24xf32, #tpu.memory_space<vmem>>, %arg4: memref<15x64xf32, #tpu.memory_space<vmem>>, %arg5: memref<1x64xf32, #tpu.memory_space<vmem>>, %arg6: memref<320x128xf32, #tpu.memory_space<vmem>>, %arg7: memref<1x128xf32, #tpu.memory_space<vmem>>, %arg8: memref<128x64xf32, #tpu.memory_space<vmem>>, %arg9: memref<1x64xf32, #tpu.memory_space<vmem>>, %arg10: memref<64x64xf32, #tpu.memory_space<vmem>>, %arg11: memref<1x64xf32, #tpu.memory_space<vmem>>, %arg12: memref<2x64xf32, #tpu.memory_space<vmem>>, %arg13: memref<40x64xf32, #tpu.memory_space<vmem>>) attributes {dimension_semantics = [#tpu.dimension_semantics<parallel>], iteration_bounds = array<i64: 1>, scalar_prefetch = 0 : i64, scratch_operands = 1 : i64, tpu.core_type = #tpu.core_type<tc>, window_params = [{transform_indices = @transform_0, window_bounds = array<i64: 24, 15>}, {pipeline_mode = #tpu.pipeline_mode<synchronous>, transform_indices = @transform_1, window_bounds = array<i64: 24, 1>}, {pipeline_mode = #tpu.pipeline_mode<synchronous>, transform_indices = @transform_2, window_bounds = array<i64: 2, 24>}, {pipeline_mode = #tpu.pipeline_mode<synchronous>, transform_indices = @transform_3, window_bounds = array<i64: 15, 64>}, {pipeline_mode = #tpu.pipeline_mode<synchronous>, transform_indices = @transform_4, window_bounds = array<i64: 1, 64>}, {pipeline_mode = #tpu.pipeline_mode<synchronous>, transform_indices = @transform_5, window_bounds = array<i64: 320, 128>}, {pipeline_mode = #tpu.pipeline_mode<synchronous>, transform_indices = @transform_6, window_bounds = array<i64: 1, 128>}, {pipeline_mode = #tpu.pipeline_mode<synchronous>, transform_indices = @transform_7, window_bounds = array<i64: 128, 64>}, {pipeline_mode = #tpu.pipeline_mode<synchronous>, transform_indices = @transform_8, window_bounds = array<i64: 1, 64>}, {pipeline_mode = #tpu.pipeline_mode<synchronous>, transform_indices = @transform_9, window_bounds = array<i64: 64, 64>}, {pipeline_mode = #tpu.pipeline_mode<synchronous>, transform_indices = @transform_10, window_bounds = array<i64: 1, 64>}, {transform_indices = @transform_11, window_bounds = array<i64: 2, 64>}]} {
    %c0 = arith.constant 0 : index
    %c0_0 = arith.constant 0 : index
    %0 = vector.load %arg1[%c0, %c0_0] : memref<24x15xf32, #tpu.memory_space<vmem>>, vector<24x15xf32>
    %c0_1 = arith.constant 0 : index
    %c0_2 = arith.constant 0 : index
    %1 = vector.load %arg4[%c0_1, %c0_2] : memref<15x64xf32, #tpu.memory_space<vmem>>, vector<15x64xf32>
    %cst = arith.constant dense<0.000000e+00> : vector<24x64xf32>
    %2 = tpu.matmul %0, %1, %cst {dimension_numbers = #tpu.dot_dimension_numbers<[1], [0], [0], [1], [0, 0, 1, 1], [], []>} : vector<24x15xf32>, vector<15x64xf32>, vector<24x64xf32> -> vector<24x64xf32>
    %c0_3 = arith.constant 0 : index
    %c0_4 = arith.constant 0 : index
    %3 = vector.load %arg5[%c0_3, %c0_4] : memref<1x64xf32, #tpu.memory_space<vmem>>, vector<1x64xf32>
    %4 = vector.broadcast %3 : vector<1x64xf32> to vector<24x64xf32>
    %5 = arith.addf %2, %4 : vector<24x64xf32>
    %cst_5 = arith.constant 0.000000e+00 : f32
    %6 = vector.broadcast %cst_5 : f32 to vector<24x64xf32>
    %7 = arith.maximumf %5, %6 : vector<24x64xf32>
    %c0_6 = arith.constant 0 : index
    %c0_7 = arith.constant 0 : index
    %8 = vector.load %arg2[%c0_6, %c0_7] : memref<24x1xf32, #tpu.memory_space<vmem>>, vector<24x1xf32>
    %9 = vector.broadcast %8 : vector<24x1xf32> to vector<24x64xf32>
    %10 = arith.mulf %7, %9 : vector<24x64xf32>
    %cst_8 = arith.constant 0.000000e+00 : f32
    %11 = vector.broadcast %cst_8 : f32 to vector<8x64xf32>
    %c0_9 = arith.constant 0 : index
    %c0_10 = arith.constant 0 : index
    %12 = vector.load %arg13[%c0_9, %c0_10] : memref<40x64xf32, #tpu.memory_space<vmem>>, vector<8x64xf32>
    tpu.vector_store %arg13[%c0_9, %c0_10], %11 {strides = array<i32>} : memref<40x64xf32, #tpu.memory_space<vmem>>, vector<8x64xf32>,
    %c8 = arith.constant 8 : index
    %c0_11 = arith.constant 0 : index
    %13 = vector.load %arg13[%c8, %c0_11] : memref<40x64xf32, #tpu.memory_space<vmem>>, vector<24x64xf32>
    tpu.vector_store %arg13[%c8, %c0_11], %10 {strides = array<i32>} : memref<40x64xf32, #tpu.memory_space<vmem>>, vector<24x64xf32>,
    %c32 = arith.constant 32 : index
    %c0_12 = arith.constant 0 : index
    %14 = vector.load %arg13[%c32, %c0_12] : memref<40x64xf32, #tpu.memory_space<vmem>>, vector<8x64xf32>
    tpu.vector_store %arg13[%c32, %c0_12], %11 {strides = array<i32>} : memref<40x64xf32, #tpu.memory_space<vmem>>, vector<8x64xf32>,
    %c6 = arith.constant 6 : index
    %c0_13 = arith.constant 0 : index
    %15 = vector.load %arg13[%c6, %c0_13] : memref<40x64xf32, #tpu.memory_space<vmem>>, vector<24x64xf32>
    %c0_14 = arith.constant 0 : index
    %c0_15 = arith.constant 0 : index
    %16 = vector.load %arg6[%c0_14, %c0_15] : memref<320x128xf32, #tpu.memory_space<vmem>>, vector<64x128xf32>
    %cst_16 = arith.constant dense<0.000000e+00> : vector<24x128xf32>
    %17 = tpu.matmul %15, %16, %cst_16 {dimension_numbers = #tpu.dot_dimension_numbers<[1], [0], [0], [1], [0, 0, 1, 1], [], []>} : vector<24x64xf32>, vector<64x128xf32>, vector<24x128xf32> -> vector<24x128xf32>
    %c7 = arith.constant 7 : index
    %c0_17 = arith.constant 0 : index
    %18 = vector.load %arg13[%c7, %c0_17] : memref<40x64xf32, #tpu.memory_space<vmem>>, vector<24x64xf32>
    %c64 = arith.constant 64 : index
    %c0_18 = arith.constant 0 : index
    %19 = vector.load %arg6[%c64, %c0_18] : memref<320x128xf32, #tpu.memory_space<vmem>>, vector<64x128xf32>
    %cst_19 = arith.constant dense<0.000000e+00> : vector<24x128xf32>
    %20 = tpu.matmul %18, %19, %cst_19 {dimension_numbers = #tpu.dot_dimension_numbers<[1], [0], [0], [1], [0, 0, 1, 1], [], []>} : vector<24x64xf32>, vector<64x128xf32>, vector<24x128xf32> -> vector<24x128xf32>
    %21 = arith.addf %17, %20 : vector<24x128xf32>
    %c8_20 = arith.constant 8 : index
    %c0_21 = arith.constant 0 : index
    %22 = vector.load %arg13[%c8_20, %c0_21] : memref<40x64xf32, #tpu.memory_space<vmem>>, vector<24x64xf32>
    %c128 = arith.constant 128 : index
    %c0_22 = arith.constant 0 : index
    %23 = vector.load %arg6[%c128, %c0_22] : memref<320x128xf32, #tpu.memory_space<vmem>>, vector<64x128xf32>
    %cst_23 = arith.constant dense<0.000000e+00> : vector<24x128xf32>
    %24 = tpu.matmul %22, %23, %cst_23 {dimension_numbers = #tpu.dot_dimension_numbers<[1], [0], [0], [1], [0, 0, 1, 1], [], []>} : vector<24x64xf32>, vector<64x128xf32>, vector<24x128xf32> -> vector<24x128xf32>
    %25 = arith.addf %21, %24 : vector<24x128xf32>
    %c9 = arith.constant 9 : index
    %c0_24 = arith.constant 0 : index
    %26 = vector.load %arg13[%c9, %c0_24] : memref<40x64xf32, #tpu.memory_space<vmem>>, vector<24x64xf32>
    %c192 = arith.constant 192 : index
    %c0_25 = arith.constant 0 : index
    %27 = vector.load %arg6[%c192, %c0_25] : memref<320x128xf32, #tpu.memory_space<vmem>>, vector<64x128xf32>
    %cst_26 = arith.constant dense<0.000000e+00> : vector<24x128xf32>
    %28 = tpu.matmul %26, %27, %cst_26 {dimension_numbers = #tpu.dot_dimension_numbers<[1], [0], [0], [1], [0, 0, 1, 1], [], []>} : vector<24x64xf32>, vector<64x128xf32>, vector<24x128xf32> -> vector<24x128xf32>
    %29 = arith.addf %25, %28 : vector<24x128xf32>
    %c10 = arith.constant 10 : index
    %c0_27 = arith.constant 0 : index
    %30 = vector.load %arg13[%c10, %c0_27] : memref<40x64xf32, #tpu.memory_space<vmem>>, vector<24x64xf32>
    %c256 = arith.constant 256 : index
    %c0_28 = arith.constant 0 : index
    %31 = vector.load %arg6[%c256, %c0_28] : memref<320x128xf32, #tpu.memory_space<vmem>>, vector<64x128xf32>
    %cst_29 = arith.constant dense<0.000000e+00> : vector<24x128xf32>
    %32 = tpu.matmul %30, %31, %cst_29 {dimension_numbers = #tpu.dot_dimension_numbers<[1], [0], [0], [1], [0, 0, 1, 1], [], []>} : vector<24x64xf32>, vector<64x128xf32>, vector<24x128xf32> -> vector<24x128xf32>
    %33 = arith.addf %29, %32 : vector<24x128xf32>
    %c0_30 = arith.constant 0 : index
    %c0_31 = arith.constant 0 : index
    %34 = vector.load %arg7[%c0_30, %c0_31] : memref<1x128xf32, #tpu.memory_space<vmem>>, vector<1x128xf32>
    %35 = vector.broadcast %34 : vector<1x128xf32> to vector<24x128xf32>
    %36 = arith.addf %33, %35 : vector<24x128xf32>
    %cst_32 = arith.constant 0.000000e+00 : f32
    %37 = vector.broadcast %cst_32 : f32 to vector<24x128xf32>
    %38 = arith.maximumf %36, %37 : vector<24x128xf32>
    %c0_33 = arith.constant 0 : index
    %c0_34 = arith.constant 0 : index
    %39 = vector.load %arg3[%c0_33, %c0_34] : memref<2x24xf32, #tpu.memory_space<vmem>>, vector<2x24xf32>
    %cst_35 = arith.constant dense<0.000000e+00> : vector<2x128xf32>
    %40 = tpu.matmul %39, %38, %cst_35 {dimension_numbers = #tpu.dot_dimension_numbers<[1], [0], [0], [1], [0, 0, 1, 1], [], []>} : vector<2x24xf32>, vector<24x128xf32>, vector<2x128xf32> -> vector<2x128xf32>
    %c0_36 = arith.constant 0 : index
    %c0_37 = arith.constant 0 : index
    %41 = vector.load %arg8[%c0_36, %c0_37] : memref<128x64xf32, #tpu.memory_space<vmem>>, vector<128x64xf32>
    %cst_38 = arith.constant dense<0.000000e+00> : vector<2x64xf32>
    %42 = tpu.matmul %40, %41, %cst_38 {dimension_numbers = #tpu.dot_dimension_numbers<[1], [0], [0], [1], [0, 0, 1, 1], [], []>} : vector<2x128xf32>, vector<128x64xf32>, vector<2x64xf32> -> vector<2x64xf32>
    %c0_39 = arith.constant 0 : index
    %c0_40 = arith.constant 0 : index
    %43 = vector.load %arg9[%c0_39, %c0_40] : memref<1x64xf32, #tpu.memory_space<vmem>>, vector<1x64xf32>
    %44 = vector.broadcast %43 : vector<1x64xf32> to vector<2x64xf32>
    %45 = arith.addf %42, %44 : vector<2x64xf32>
    %cst_41 = arith.constant 0.000000e+00 : f32
    %46 = vector.broadcast %cst_41 : f32 to vector<2x64xf32>
    %47 = arith.maximumf %45, %46 : vector<2x64xf32>
    %c0_42 = arith.constant 0 : index
    %c0_43 = arith.constant 0 : index
    %48 = vector.load %arg10[%c0_42, %c0_43] : memref<64x64xf32, #tpu.memory_space<vmem>>, vector<64x64xf32>
    %cst_44 = arith.constant dense<0.000000e+00> : vector<2x64xf32>
    %49 = tpu.matmul %47, %48, %cst_44 {dimension_numbers = #tpu.dot_dimension_numbers<[1], [0], [0], [1], [0, 0, 1, 1], [], []>} : vector<2x64xf32>, vector<64x64xf32>, vector<2x64xf32> -> vector<2x64xf32>
    %c0_45 = arith.constant 0 : index
    %c0_46 = arith.constant 0 : index
    %50 = vector.load %arg11[%c0_45, %c0_46] : memref<1x64xf32, #tpu.memory_space<vmem>>, vector<1x64xf32>
    %51 = vector.broadcast %50 : vector<1x64xf32> to vector<2x64xf32>
    %52 = arith.addf %49, %51 : vector<2x64xf32>
    %53 = arith.mulf %52, %52 : vector<2x64xf32>
    %cst_47 = arith.constant dense<0.000000e+00> : vector<2xf32>
    %54 = vector.multi_reduction <add>, %53, %cst_47 [1] : vector<2x64xf32> to vector<2xf32>
    %55 = vector.shape_cast %54 : vector<2xf32> to vector<2x1xf32>
    %cst_48 = arith.constant 1.000000e-24 : f32
    %56 = vector.broadcast %cst_48 : f32 to vector<2x1xf32>
    %57 = arith.maximumf %55, %56 : vector<2x1xf32>
    %58 = math.rsqrt %57 : vector<2x1xf32>
    %59 = vector.broadcast %58 : vector<2x1xf32> to vector<2x64xf32>
    %60 = arith.mulf %52, %59 : vector<2x64xf32>
    %c0_49 = arith.constant 0 : index
    %c0_50 = arith.constant 0 : index
    %61 = vector.load %arg12[%c0_49, %c0_50] : memref<2x64xf32, #tpu.memory_space<vmem>>, vector<2x64xf32>
    tpu.vector_store %arg12[%c0_49, %c0_50], %60 {strides = array<i32>} : memref<2x64xf32, #tpu.memory_space<vmem>>, vector<2x64xf32>,
    return
  }
  func.func @transform_0(%arg0: i32) -> (i32, i32) {
    %c0_i32 = arith.constant 0 : i32
    %c0_i32_0 = arith.constant 0 : i32
    return %arg0, %c0_i32 : i32, i32
  }
  func.func @transform_1(%arg0: i32) -> (i32, i32) {
    %c0_i32 = arith.constant 0 : i32
    %c0_i32_0 = arith.constant 0 : i32
    %c0_i32_1 = arith.constant 0 : i32
    return %c0_i32, %c0_i32_0 : i32, i32
  }
  func.func @transform_2(%arg0: i32) -> (i32, i32) {
    %c0_i32 = arith.constant 0 : i32
    %c0_i32_0 = arith.constant 0 : i32
    %c0_i32_1 = arith.constant 0 : i32
    return %c0_i32, %c0_i32_0 : i32, i32
  }
  func.func @transform_3(%arg0: i32) -> (i32, i32) {
    %c0_i32 = arith.constant 0 : i32
    %c0_i32_0 = arith.constant 0 : i32
    %c0_i32_1 = arith.constant 0 : i32
    return %c0_i32, %c0_i32_0 : i32, i32
  }
  func.func @transform_4(%arg0: i32) -> (i32, i32) {
    %c0_i32 = arith.constant 0 : i32
    %c0_i32_0 = arith.constant 0 : i32
    %c0_i32_1 = arith.constant 0 : i32
    return %c0_i32, %c0_i32_0 : i32, i32
  }
  func.func @transform_5(%arg0: i32) -> (i32, i32) {
    %c0_i32 = arith.constant 0 : i32
    %c0_i32_0 = arith.constant 0 : i32
    %c0_i32_1 = arith.constant 0 : i32
    return %c0_i32, %c0_i32_0 : i32, i32
  }
  func.func @transform_6(%arg0: i32) -> (i32, i32) {
    %c0_i32 = arith.constant 0 : i32
    %c0_i32_0 = arith.constant 0 : i32
    %c0_i32_1 = arith.constant 0 : i32
    return %c0_i32, %c0_i32_0 : i32, i32
  }
  func.func @transform_7(%arg0: i32) -> (i32, i32) {
    %c0_i32 = arith.constant 0 : i32
    %c0_i32_0 = arith.constant 0 : i32
    %c0_i32_1 = arith.constant 0 : i32
    return %c0_i32, %c0_i32_0 : i32, i32
  }
  func.func @transform_8(%arg0: i32) -> (i32, i32) {
    %c0_i32 = arith.constant 0 : i32
    %c0_i32_0 = arith.constant 0 : i32
    %c0_i32_1 = arith.constant 0 : i32
    return %c0_i32, %c0_i32_0 : i32, i32
  }
  func.func @transform_9(%arg0: i32) -> (i32, i32) {
    %c0_i32 = arith.constant 0 : i32
    %c0_i32_0 = arith.constant 0 : i32
    %c0_i32_1 = arith.constant 0 : i32
    return %c0_i32, %c0_i32_0 : i32, i32
  }
  func.func @transform_10(%arg0: i32) -> (i32, i32) {
    %c0_i32 = arith.constant 0 : i32
    %c0_i32_0 = arith.constant 0 : i32
    %c0_i32_1 = arith.constant 0 : i32
    return %c0_i32, %c0_i32_0 : i32, i32
  }
  func.func @transform_11(%arg0: i32) -> (i32, i32) {
    %c0_i32 = arith.constant 0 : i32
    %c0_i32_0 = arith.constant 0 : i32
    return %arg0, %c0_i32 : i32, i32
  }
}

</mosaic_0001>

<llo_original>
// kernel: tpu_custom_call.1
$region0: #{tpu_custom_call.1}
  #allocation0 [shape = 'u32[]', space=smem, size = 0x4, offset = 0x4, fixed_abs, tag = 'smem constant byte address 0x4 - core index']
  #allocation1 [shape = 'u32[144,128]{1,0:T(1,128)}', space=vmem, size = 0x12000, scoped, tag = 'internal scratch']
  #allocation2 [shape = 'f32[40,64]{1,0:T(8,128)}', space=vmem, size = 0x5000, scoped, tag = 'scratch operand']
  %s0 = inlined_call_operand.vmem [shape: f32[24,15], index: 0, kind: input, shape index: {}]
  %s1 = inlined_call_operand.vmem [shape: f32[24,1], index: 1, kind: input, shape index: {}]
  %s2 = inlined_call_operand.vmem [shape: f32[2,24], index: 2, kind: input, shape index: {}]
  %s3 = inlined_call_operand.vmem [shape: f32[15,64], index: 3, kind: input, shape index: {}]
  %s4 = inlined_call_operand.vmem [shape: f32[1,64], index: 4, kind: input, shape index: {}]
  %s5 = inlined_call_operand.hbm [shape: f32[320,128], index: 5, kind: input, shape index: {}]
  %s6 = inlined_call_operand.vmem [shape: f32[1,128], index: 6, kind: input, shape index: {}]
  %s7 = inlined_call_operand.vmem [shape: f32[128,64], index: 7, kind: input, shape index: {}]
  %s8 = inlined_call_operand.vmem [shape: f32[1,64], index: 8, kind: input, shape index: {}]
  %s9 = inlined_call_operand.vmem [shape: f32[64,64], index: 9, kind: input, shape index: {}]
  %s10 = inlined_call_operand.vmem [shape: f32[1,64], index: 10, kind: input, shape index: {}]
  %s11 = inlined_call_operand.hbm [shape: f32[2,64], index: 11, kind: output, shape index: {}]
  %s12 = sld [smem:[#allocation0]]
  $region58: #{tpu_custom_call.1} parent=0
    _
  %s14 = ssub.s32 1, %s12
  %s15 = scalar_select 0, %s14, %s12
  $region1: #{tpu_custom_call.1} parent=0
    #allocation3 [shape = 'u8[163840]{0}', space=vmem, size = 0x28000, scoped, tag = 'input window, operand 5, single buffered']
    #allocation4 [shape = 's32[1]{0}', space=sflag, size = 0x4, scoped, tag = 'scoped memory for tpu_custom_call.1']
    #allocation5 [shape = 's32[1]{0}', space=sflag, size = 0x4, scoped, tag = 'scoped memory for tpu_custom_call.1']
    #allocation6 [shape = 'u8[1024]{0}', space=vmem, size = 0x400, scoped, tag = 'output window, operand 0, single buffered']
    %16 = vsyncpa [#allocation4], 0
    %17 = vsyncpa [#allocation5], 0
    // Predicated region
    $region2: #{tpu_custom_call.1} parent=1 // pred_check
      _
    $region3: #{tpu_custom_call.1} parent=1 // pred_check_branch
      %19 = sbr.rel (0) target = $region5
    $region4: #{tpu_custom_call.1} parent=1 // pred_region
      _
    $region5: #{tpu_custom_call.1} parent=1 // pred_fallthru
      _
    // Predicated region
    $region6: #{tpu_custom_call.1} parent=1 // pred_check
      _
    $region7: #{tpu_custom_call.1} parent=1 // pred_check_branch
      %21 = sbr.rel (0) target = $region9
    $region8: #{tpu_custom_call.1} parent=1 // pred_region
      _
    $region9: #{tpu_custom_call.1} parent=1 // pred_fallthru
      _
    // Predicated region
    $region10: #{tpu_custom_call.1} parent=1 // pred_check
      _
    $region11: #{tpu_custom_call.1} parent=1 // pred_check_branch
      %23 = sbr.rel (0) target = $region13
    $region12: #{tpu_custom_call.1} parent=1 // pred_region
      _
    $region13: #{tpu_custom_call.1} parent=1 // pred_fallthru
      _
    // Predicated region
    $region14: #{tpu_custom_call.1} parent=1 // pred_check
      _
    $region15: #{tpu_custom_call.1} parent=1 // pred_check_branch
      %25 = sbr.rel (0) target = $region17
    $region16: #{tpu_custom_call.1} parent=1 // pred_region
      _
    $region17: #{tpu_custom_call.1} parent=1 // pred_fallthru
      _
    // Predicated region
    $region18: #{tpu_custom_call.1} parent=1 // pred_check
      _
    $region19: #{tpu_custom_call.1} parent=1 // pred_check_branch
      %27 = sbr.rel (0) target = $region21
    $region20: #{tpu_custom_call.1} parent=1 // pred_region
      _
    $region21: #{tpu_custom_call.1} parent=1 // pred_fallthru
      _
    // Predicated region
    $region22: #{tpu_custom_call.1} parent=1 // pred_check
      _
    $region23: #{tpu_custom_call.1} parent=1 // pred_check_branch
      %29 = sbr.rel (0) target = $region25
    $region24: #{tpu_custom_call.1} parent=1 // pred_region
      %s31 = ssub.s32 5120, 5120
      %32 = vsyncadd [#allocation4], %s31
      %s33 = sshll.u32 [#allocation3], 4
      %s34 = int_to_ptr.vmem [resolvable:$true] %s33
      %39 = dma.hbm_to_vmem [thread:$0]  %s5, 5120, %s34, [#allocation4], 128, 128, 8
    $region25: #{tpu_custom_call.1} parent=1 // pred_fallthru
      _
    // Predicated region
    $region26: #{tpu_custom_call.1} parent=1 // pred_check
      _
    $region27: #{tpu_custom_call.1} parent=1 // pred_check_branch
      %41 = sbr.rel (0) target = $region29
    $region28: #{tpu_custom_call.1} parent=1 // pred_region
      _
    $region29: #{tpu_custom_call.1} parent=1 // pred_fallthru
      _
    // Predicated region
    $region30: #{tpu_custom_call.1} parent=1 // pred_check
      _
    $region31: #{tpu_custom_call.1} parent=1 // pred_check_branch
      %43 = sbr.rel (0) target = $region33
    $region32: #{tpu_custom_call.1} parent=1 // pred_region
      _
    $region33: #{tpu_custom_call.1} parent=1 // pred_fallthru
      _
    // Predicated region
    $region34: #{tpu_custom_call.1} parent=1 // pred_check
      _
    $region35: #{tpu_custom_call.1} parent=1 // pred_check_branch
      %45 = sbr.rel (0) target = $region37
    $region36: #{tpu_custom_call.1} parent=1 // pred_region
      _
    $region37: #{tpu_custom_call.1} parent=1 // pred_fallthru
      _
    // Predicated region
    $region38: #{tpu_custom_call.1} parent=1 // pred_check
      _
    $region39: #{tpu_custom_call.1} parent=1 // pred_check_branch
      %47 = sbr.rel (0) target = $region41
    $region40: #{tpu_custom_call.1} parent=1 // pred_region
      _
    $region41: #{tpu_custom_call.1} parent=1 // pred_fallthru
      _
    // Predicated region
    $region42: #{tpu_custom_call.1} parent=1 // pred_check
      _
    $region43: #{tpu_custom_call.1} parent=1 // pred_check_branch
      %49 = sbr.rel (0) target = $region45
    $region44: #{tpu_custom_call.1} parent=1 // pred_region
      _
    $region45: #{tpu_custom_call.1} parent=1 // pred_fallthru
      _
    // Predicated region
    $region46: #{tpu_custom_call.1} parent=1 // pred_check
      _
    $region47: #{tpu_custom_call.1} parent=1 // pred_check_branch
      %51 = sbr.rel (0) target = $region49
    $region48: #{tpu_custom_call.1} parent=1 // pred_region
      %52 = dma.done [#allocation4], 5120
    $region49: #{tpu_custom_call.1} parent=1 // pred_fallthru
      _
    %v53 = vld [vmem:[%s0] sm:$0xff]
    %v54 = vld [vmem:[%s0 + $0x8] sm:$0xff]
    %v55 = vld [vmem:[%s0 + $0x10] sm:$0xff]
    %v56 = vld [vmem:[%s3] sm:$0xff]
    %v57 = vld [vmem:[%s3 + $0x8] sm:$0x7f]
    %v58 = vld [vmem:[%s4] sm:$0x1]
    %v60 = vlaneseq
    %v61 = vshrl.u32 %v60, 7
    %v62 = vsub.s32 0, %v61
    %v63 = vrot.slane %v58, %v62
    %vm65 = vcmask 121856
    %v67 = vsel %vm65, %v53, 0
    %v70 = vsel %vm65, %v54, 0
    %v73 = vsel %vm65, %v55, 0
    %vm75 = vcmask 1046528
    %v77 = vsel %vm75, %v57, 0
    %79 = vmatprep.subr.mxu0 0.0
    %80 = vmatpush1.msra.mxu0 %v56
    %81 = vmatprep.subr.mxu0 0.0
    %82 = vmatpush1.msra.mxu0 %v77
    %83 = vmatprep.subr.mxu0 0.0
    %84 = vmatpush1.msra.mxu0 0.0
    %85 = vmatprep.subr.mxu0 0.0
    %86 = vmatpush1.msra.mxu0 0.0
    %87 = vmatprep.subr.mxu0 0.0
    %88 = vmatpush1.msra.mxu0 0.0
    %89 = vmatprep.subr.mxu0 0.0
    %90 = vmatpush1.msra.mxu0 0.0
    %91 = vmatprep.subr.mxu0 0.0
    %92 = vmatpush1.msra.mxu0 0.0
    %93 = vmatprep.subr.mxu0 0.0
    %94 = vmatpush1.msra.mxu0 0.0
    %95 = vmatprep.subr.mxu0 0.0
    %96 = vmatpush1.msra.mxu0 0.0
    %97 = vmatprep.subr.mxu0 0.0
    %98 = vmatpush1.msra.mxu0 0.0
    %99 = vmatprep.subr.mxu0 0.0
    %100 = vmatpush1.msra.mxu0 0.0
    %101 = vmatprep.subr.mxu0 0.0
    %102 = vmatpush1.msra.mxu0 0.0
    %103 = vmatprep.subr.mxu0 0.0
    %104 = vmatpush1.msra.mxu0 0.0
    %105 = vmatprep.subr.mxu0 0.0
    %106 = vmatpush1.msra.mxu0 0.0
    %107 = vmatprep.subr.mxu0 0.0
    %108 = vmatpush1.msra.mxu0 0.0
    %109 = vmatprep.subr.mxu0 0.0
    %110 = vmatpush1.msra.mxu0 0.0
    %111 = vmatprep.subr.mxu0 0.0
    %112 = vmatpush1.msra.mxu0 0.0
    %113 = vmatprep.subr.mxu0 0.0
    %114 = vmatpush1.msra.mxu0 0.0
    %115 = vmatprep.subr.mxu0 0.0
    %116 = vmatpush1.msra.mxu0 0.0
    %117 = vmatprep.subr.mxu0 0.0
    %118 = vmatpush1.msra.mxu0 0.0
    %119 = vmatprep.subr.mxu0 0.0
    %120 = vmatpush1.msra.mxu0 0.0
    %121 = vmatprep.subr.mxu0 0.0
    %122 = vmatpush1.msra.mxu0 0.0
    %123 = vmatprep.subr.mxu0 0.0
    %124 = vmatpush1.msra.mxu0 0.0
    %125 = vmatprep.subr.mxu0 0.0
    %126 = vmatpush1.msra.mxu0 0.0
    %127 = vmatprep.subr.mxu0 0.0
    %128 = vmatpush1.msra.mxu0 0.0
    %129 = vmatprep.subr.mxu0 0.0
    %130 = vmatpush1.msra.mxu0 0.0
    %131 = vmatprep.subr.mxu0 0.0
    %132 = vmatpush1.msra.mxu0 0.0
    %133 = vmatprep.subr.mxu0 0.0
    %134 = vmatpush1.msra.mxu0 0.0
    %135 = vmatprep.subr.mxu0 0.0
    %136 = vmatpush1.msra.mxu0 0.0
    %137 = vmatprep.subr.mxu0 0.0
    %138 = vmatpush1.msra.mxu0 0.0
    %139 = vmatprep.subr.mxu0 0.0
    %140 = vmatpush1.msra.mxu0 0.0
    %141 = vmatprep.subr.mxu0 0.0
    %142 = vmatpush1.msra.mxu0 0.0
    %143 = vmatprep.mubr.f32.mxu0 0.0
    %144 = vmatmul.mubr.f32.gmra.mrb[0].mxu0 %v67
    %v145 = vpop.f32.mrb[0].mxu0
    %v146 = vadd.f32 %v63, %v145
    %v147 = vpop.f32.mrb[0].mxu0
    %148 = vmatprep.mubr.f32.mxu0 0.0
    %149 = vmatmul.mubr.f32.gmra.mrb[0].mxu0 %v70
    %v150 = vpop.f32.mrb[0].mxu0
    %v151 = vadd.f32 %v63, %v150
    %v152 = vpop.f32.mrb[0].mxu0
    %153 = vmatprep.mubr.f32.mxu0 0.0
    %154 = vmatmul.mubr.f32.gmra.mrb[0].mxu0 %v73
    %v155 = vpop.f32.mrb[0].mxu0
    %v156 = vadd.f32 %v63, %v155
    %v157 = vpop.f32.mrb[0].mxu0
    %158 = vdwg.mxu0
    %v159 = vmax.f32 %v146, 0.0
    %v160 = vmax.f32 %v151, 0.0
    %v161 = vmax.f32 %v156, 0.0
    %v162 = vld [vmem:[%s1] sm:$0xff]
    %v163 = vld [vmem:[%s1 + $0x8] sm:$0xff]
    %v164 = vld [vmem:[%s1 + $0x10] sm:$0xff]
    %166 = vset.pattern.permute.xlu0 0
    %167 = vperm.xlu0 %166, %v162
    %v168 = vpop.permute.xlu0 %167
    %171 = vset.pattern.permute.xlu0 0
    %172 = vperm.xlu0 %171, %v163
    %v173 = vpop.permute.xlu0 %172
    %176 = vset.pattern.permute.xlu0 0
    %177 = vperm.xlu0 %176, %v164
    %v178 = vpop.permute.xlu0 %177
    %v180 = vmul.f32 %v159, %v168
    %v181 = vmul.f32 %v160, %v173
    %v182 = vmul.f32 %v161, %v178
    %vm183 = vcmask 523264
    %184 = vst.msk [vmem:[#allocation2] sm:$0xff] %vm183, 0.0
    %185 = vst.msk [vmem:[#allocation2 + $0x8] sm:$0xff] %vm183, %v180
    %186 = vst.msk [vmem:[#allocation2 + $0x10] sm:$0xff] %vm183, %v181
    %187 = vst.msk [vmem:[#allocation2 + $0x18] sm:$0xff] %vm183, %v182
    %188 = vst.msk [vmem:[#allocation2 + $0x20] sm:$0xff] %vm183, 0.0
    %v189 = vld [vmem:[#allocation2 + $0x6] sm:$0xff]
    %v190 = vld [vmem:[#allocation2 + $0xe] sm:$0xff]
    %v191 = vld [vmem:[#allocation2 + $0x16] sm:$0xff]
    %v192 = vld [vmem:[#allocation3] sm:$0xff]
    %v193 = vld [vmem:[#allocation3 + $0x8] sm:$0xff]
    %v194 = vld [vmem:[#allocation3 + $0x10] sm:$0xff]
    %v195 = vld [vmem:[#allocation3 + $0x18] sm:$0xff]
    %v196 = vld [vmem:[#allocation3 + $0x20] sm:$0xff]
    %v197 = vld [vmem:[#allocation3 + $0x28] sm:$0xff]
    %v198 = vld [vmem:[#allocation3 + $0x30] sm:$0xff]
    %v199 = vld [vmem:[#allocation3 + $0x38] sm:$0xff]
    %v200 = vld [vmem:[#allocation2 + $0x7] sm:$0xff]
    %v201 = vld [vmem:[#allocation2 + $0xf] sm:$0xff]
    %v202 = vld [vmem:[#allocation2 + $0x17] sm:$0xff]
    %v203 = vld [vmem:[#allocation3 + $0x40] sm:$0xff]
    %v204 = vld [vmem:[#allocation3 + $0x48] sm:$0xff]
    %v205 = vld [vmem:[#allocation3 + $0x50] sm:$0xff]
    %v206 = vld [vmem:[#allocation3 + $0x58] sm:$0xff]
    %v207 = vld [vmem:[#allocation3 + $0x60] sm:$0xff]
    %v208 = vld [vmem:[#allocation3 + $0x68] sm:$0xff]
    %v209 = vld [vmem:[#allocation3 + $0x70] sm:$0xff]
    %v210 = vld [vmem:[#allocation3 + $0x78] sm:$0xff]
    %v212 = vsel %vm183, %v200, 0
    %v215 = vsel %vm183, %v201, 0
    %v218 = vsel %vm183, %v202, 0
    %220 = vmatprep.subr.mxu0 0.0
    %221 = vmatpush1.msra.mxu0 %v203
    %222 = vmatprep.subr.mxu0 0.0
    %223 = vmatpush1.msra.mxu0 %v204
    %224 = vmatprep.subr.mxu0 0.0
    %225 = vmatpush1.msra.mxu0 %v205
    %226 = vmatprep.subr.mxu0 0.0
    %227 = vmatpush1.msra.mxu0 %v206
    %228 = vmatprep.subr.mxu0 0.0
    %229 = vmatpush1.msra.mxu0 %v207
    %230 = vmatprep.subr.mxu0 0.0
    %231 = vmatpush1.msra.mxu0 %v208
    %232 = vmatprep.subr.mxu0 0.0
    %233 = vmatpush1.msra.mxu0 %v209
    %234 = vmatprep.subr.mxu0 0.0
    %235 = vmatpush1.msra.mxu0 %v210
    %236 = vmatprep.subr.mxu0 0.0
    %237 = vmatpush1.msra.mxu0 0.0
    %238 = vmatprep.subr.mxu0 0.0
    %239 = vmatpush1.msra.mxu0 0.0
    %240 = vmatprep.subr.mxu0 0.0
    %241 = vmatpush1.msra.mxu0 0.0
    %242 = vmatprep.subr.mxu0 0.0
    %243 = vmatpush1.msra.mxu0 0.0
    %244 = vmatprep.subr.mxu0 0.0
    %245 = vmatpush1.msra.mxu0 0.0
    %246 = vmatprep.subr.mxu0 0.0
    %247 = vmatpush1.msra.mxu0 0.0
    %248 = vmatprep.subr.mxu0 0.0
    %249 = vmatpush1.msra.mxu0 0.0
    %250 = vmatprep.subr.mxu0 0.0
    %251 = vmatpush1.msra.mxu0 0.0
    %252 = vmatprep.subr.mxu0 0.0
    %253 = vmatpush1.msra.mxu0 0.0
    %254 = vmatprep.subr.mxu0 0.0
    %255 = vmatpush1.msra.mxu0 0.0
    %256 = vmatprep.subr.mxu0 0.0
    %257 = vmatpush1.msra.mxu0 0.0
    %258 = vmatprep.subr.mxu0 0.0
    %259 = vmatpush1.msra.mxu0 0.0
    %260 = vmatprep.subr.mxu0 0.0
    %261 = vmatpush1.msra.mxu0 0.0
    %262 = vmatprep.subr.mxu0 0.0
    %263 = vmatpush1.msra.mxu0 0.0
    %264 = vmatprep.subr.mxu0 0.0
    %265 = vmatpush1.msra.mxu0 0.0
    %266 = vmatprep.subr.mxu0 0.0
    %267 = vmatpush1.msra.mxu0 0.0
    %268 = vmatprep.subr.mxu0 0.0
    %269 = vmatpush1.msra.mxu0 0.0
    %270 = vmatprep.subr.mxu0 0.0
    %271 = vmatpush1.msra.mxu0 0.0
    %272 = vmatprep.subr.mxu0 0.0
    %273 = vmatpush1.msra.mxu0 0.0
    %274 = vmatprep.subr.mxu0 0.0
    %275 = vmatpush1.msra.mxu0 0.0
    %276 = vmatprep.subr.mxu0 0.0
    %277 = vmatpush1.msra.mxu0 0.0
    %278 = vmatprep.subr.mxu0 0.0
    %279 = vmatpush1.msra.mxu0 0.0
    %280 = vmatprep.subr.mxu0 0.0
    %281 = vmatpush1.msra.mxu0 0.0
    %282 = vmatprep.subr.mxu0 0.0
    %283 = vmatpush1.msra.mxu0 0.0
    %284 = vmatprep.mubr.f32.mxu0 0.0
    %285 = vmatmul.mubr.f32.gmra.mrb[0].mxu0 %v212
    %v286 = vpop.f32.mrb[0].mxu0
    %v287 = vadd.f32 0.0, %v286
    %v288 = vpop.f32.mrb[0].mxu0
    %289 = vmatprep.mubr.f32.mxu0 0.0
    %290 = vmatmul.mubr.f32.gmra.mrb[0].mxu0 %v215
    %v291 = vpop.f32.mrb[0].mxu0
    %v292 = vadd.f32 0.0, %v291
    %v293 = vpop.f32.mrb[0].mxu0
    %294 = vmatprep.mubr.f32.mxu0 0.0
    %295 = vmatmul.mubr.f32.gmra.mrb[0].mxu0 %v218
    %v296 = vpop.f32.mrb[0].mxu0
    %v297 = vadd.f32 0.0, %v296
    %v298 = vpop.f32.mrb[0].mxu0
    %299 = vdwg.mxu0
    %v301 = vsel %vm183, %v189, 0
    %v304 = vsel %vm183, %v190, 0
    %v307 = vsel %vm183, %v191, 0
    %309 = vmatprep.subr.mxu0 0.0
    %310 = vmatpush1.msra.mxu0 %v192
    %311 = vmatprep.subr.mxu0 0.0
    %312 = vmatpush1.msra.mxu0 %v193
    %313 = vmatprep.subr.mxu0 0.0
    %314 = vmatpush1.msra.mxu0 %v194
    %315 = vmatprep.subr.mxu0 0.0
    %316 = vmatpush1.msra.mxu0 %v195
    %317 = vmatprep.subr.mxu0 0.0
    %318 = vmatpush1.msra.mxu0 %v196
    %319 = vmatprep.subr.mxu0 0.0
    %320 = vmatpush1.msra.mxu0 %v197
    %321 = vmatprep.subr.mxu0 0.0
    %322 = vmatpush1.msra.mxu0 %v198
    %323 = vmatprep.subr.mxu0 0.0
    %324 = vmatpush1.msra.mxu0 %v199
    %325 = vmatprep.subr.mxu0 0.0
    %326 = vmatpush1.msra.mxu0 0.0
    %327 = vmatprep.subr.mxu0 0.0
    %328 = vmatpush1.msra.mxu0 0.0
    %329 = vmatprep.subr.mxu0 0.0
    %330 = vmatpush1.msra.mxu0 0.0
    %331 = vmatprep.subr.mxu0 0.0
    %332 = vmatpush1.msra.mxu0 0.0
    %333 = vmatprep.subr.mxu0 0.0
    %334 = vmatpush1.msra.mxu0 0.0
    %335 = vmatprep.subr.mxu0 0.0
    %336 = vmatpush1.msra.mxu0 0.0
    %337 = vmatprep.subr.mxu0 0.0
    %338 = vmatpush1.msra.mxu0 0.0
    %339 = vmatprep.subr.mxu0 0.0
    %340 = vmatpush1.msra.mxu0 0.0
    %341 = vmatprep.subr.mxu0 0.0
    %342 = vmatpush1.msra.mxu0 0.0
    %343 = vmatprep.subr.mxu0 0.0
    %344 = vmatpush1.msra.mxu0 0.0
    %345 = vmatprep.subr.mxu0 0.0
    %346 = vmatpush1.msra.mxu0 0.0
    %347 = vmatprep.subr.mxu0 0.0
    %348 = vmatpush1.msra.mxu0 0.0
    %349 = vmatprep.subr.mxu0 0.0
    %350 = vmatpush1.msra.mxu0 0.0
    %351 = vmatprep.subr.mxu0 0.0
    %352 = vmatpush1.msra.mxu0 0.0
    %353 = vmatprep.subr.mxu0 0.0
    %354 = vmatpush1.msra.mxu0 0.0
    %355 = vmatprep.subr.mxu0 0.0
    %356 = vmatpush1.msra.mxu0 0.0
    %357 = vmatprep.subr.mxu0 0.0
    %358 = vmatpush1.msra.mxu0 0.0
    %359 = vmatprep.subr.mxu0 0.0
    %360 = vmatpush1.msra.mxu0 0.0
    %361 = vmatprep.subr.mxu0 0.0
    %362 = vmatpush1.msra.mxu0 0.0
    %363 = vmatprep.subr.mxu0 0.0
    %364 = vmatpush1.msra.mxu0 0.0
    %365 = vmatprep.subr.mxu0 0.0
    %366 = vmatpush1.msra.mxu0 0.0
    %367 = vmatprep.subr.mxu0 0.0
    %368 = vmatpush1.msra.mxu0 0.0
    %369 = vmatprep.subr.mxu0 0.0
    %370 = vmatpush1.msra.mxu0 0.0
    %371 = vmatprep.subr.mxu0 0.0
    %372 = vmatpush1.msra.mxu0 0.0
    %373 = vmatprep.mubr.f32.mxu0 0.0
    %374 = vmatmul.mubr.f32.gmra.mrb[0].mxu0 %v301
    %v375 = vpop.f32.mrb[0].mxu0
    %v376 = vadd.f32 %v287, %v375
    %v377 = vpop.f32.mrb[0].mxu0
    %378 = vmatprep.mubr.f32.mxu0 0.0
    %379 = vmatmul.mubr.f32.gmra.mrb[0].mxu0 %v304
    %v380 = vpop.f32.mrb[0].mxu0
    %v381 = vadd.f32 %v292, %v380
    %v382 = vpop.f32.mrb[0].mxu0
    %383 = vmatprep.mubr.f32.mxu0 0.0
    %384 = vmatmul.mubr.f32.gmra.mrb[0].mxu0 %v307
    %v385 = vpop.f32.mrb[0].mxu0
    %v386 = vadd.f32 %v297, %v385
    %v387 = vpop.f32.mrb[0].mxu0
    %388 = vdwg.mxu0
    %v389 = vld [vmem:[#allocation2 + $0x8] sm:$0xff]
    %v390 = vld [vmem:[#allocation2 + $0x10] sm:$0xff]
    %v391 = vld [vmem:[#allocation2 + $0x18] sm:$0xff]
    %v392 = vld [vmem:[#allocation3 + $0x80] sm:$0xff]
    %v393 = vld [vmem:[#allocation3 + $0x88] sm:$0xff]
    %v394 = vld [vmem:[#allocation3 + $0x90] sm:$0xff]
    %v395 = vld [vmem:[#allocation3 + $0x98] sm:$0xff]
    %v396 = vld [vmem:[#allocation3 + $0xa0] sm:$0xff]
    %v397 = vld [vmem:[#allocation3 + $0xa8] sm:$0xff]
    %v398 = vld [vmem:[#allocation3 + $0xb0] sm:$0xff]
    %v399 = vld [vmem:[#allocation3 + $0xb8] sm:$0xff]
    %v401 = vsel %vm183, %v389, 0
    %v404 = vsel %vm183, %v390, 0
    %v407 = vsel %vm183, %v391, 0
    %409 = vmatprep.subr.mxu0 0.0
    %410 = vmatpush1.msra.mxu0 %v392
    %411 = vmatprep.subr.mxu0 0.0
    %412 = vmatpush1.msra.mxu0 %v393
    %413 = vmatprep.subr.mxu0 0.0
    %414 = vmatpush1.msra.mxu0 %v394
    %415 = vmatprep.subr.mxu0 0.0
    %416 = vmatpush1.msra.mxu0 %v395
    %417 = vmatprep.subr.mxu0 0.0
    %418 = vmatpush1.msra.mxu0 %v396
    %419 = vmatprep.subr.mxu0 0.0
    %420 = vmatpush1.msra.mxu0 %v397
    %421 = vmatprep.subr.mxu0 0.0
    %422 = vmatpush1.msra.mxu0 %v398
    %423 = vmatprep.subr.mxu0 0.0
    %424 = vmatpush1.msra.mxu0 %v399
    %425 = vmatprep.subr.mxu0 0.0
    %426 = vmatpush1.msra.mxu0 0.0
    %427 = vmatprep.subr.mxu0 0.0
    %428 = vmatpush1.msra.mxu0 0.0
    %429 = vmatprep.subr.mxu0 0.0
    %430 = vmatpush1.msra.mxu0 0.0
    %431 = vmatprep.subr.mxu0 0.0
    %432 = vmatpush1.msra.mxu0 0.0
    %433 = vmatprep.subr.mxu0 0.0
    %434 = vmatpush1.msra.mxu0 0.0
    %435 = vmatprep.subr.mxu0 0.0
    %436 = vmatpush1.msra.mxu0 0.0
    %437 = vmatprep.subr.mxu0 0.0
    %438 = vmatpush1.msra.mxu0 0.0
    %439 = vmatprep.subr.mxu0 0.0
    %440 = vmatpush1.msra.mxu0 0.0
    %441 = vmatprep.subr.mxu0 0.0
    %442 = vmatpush1.msra.mxu0 0.0
    %443 = vmatprep.subr.mxu0 0.0
    %444 = vmatpush1.msra.mxu0 0.0
    %445 = vmatprep.subr.mxu0 0.0
    %446 = vmatpush1.msra.mxu0 0.0
    %447 = vmatprep.subr.mxu0 0.0
    %448 = vmatpush1.msra.mxu0 0.0
    %449 = vmatprep.subr.mxu0 0.0
    %450 = vmatpush1.msra.mxu0 0.0
    %451 = vmatprep.subr.mxu0 0.0
    %452 = vmatpush1.msra.mxu0 0.0
    %453 = vmatprep.subr.mxu0 0.0
    %454 = vmatpush1.msra.mxu0 0.0
    %455 = vmatprep.subr.mxu0 0.0
    %456 = vmatpush1.msra.mxu0 0.0
    %457 = vmatprep.subr.mxu0 0.0
    %458 = vmatpush1.msra.mxu0 0.0
    %459 = vmatprep.subr.mxu0 0.0
    %460 = vmatpush1.msra.mxu0 0.0
    %461 = vmatprep.subr.mxu0 0.0
    %462 = vmatpush1.msra.mxu0 0.0
    %463 = vmatprep.subr.mxu0 0.0
    %464 = vmatpush1.msra.mxu0 0.0
    %465 = vmatprep.subr.mxu0 0.0
    %466 = vmatpush1.msra.mxu0 0.0
    %467 = vmatprep.subr.mxu0 0.0
    %468 = vmatpush1.msra.mxu0 0.0
    %469 = vmatprep.subr.mxu0 0.0
    %470 = vmatpush1.msra.mxu0 0.0
    %471 = vmatprep.subr.mxu0 0.0
    %472 = vmatpush1.msra.mxu0 0.0
    %473 = vmatprep.mubr.f32.mxu0 0.0
    %474 = vmatmul.mubr.f32.gmra.mrb[0].mxu0 %v401
    %v475 = vpop.f32.mrb[0].mxu0
    %v476 = vadd.f32 0.0, %v475
    %v477 = vpop.f32.mrb[0].mxu0
    %478 = vmatprep.mubr.f32.mxu0 0.0
    %479 = vmatmul.mubr.f32.gmra.mrb[0].mxu0 %v404
    %v480 = vpop.f32.mrb[0].mxu0
    %v481 = vadd.f32 0.0, %v480
    %v482 = vpop.f32.mrb[0].mxu0
    %483 = vmatprep.mubr.f32.mxu0 0.0
    %484 = vmatmul.mubr.f32.gmra.mrb[0].mxu0 %v407
    %v485 = vpop.f32.mrb[0].mxu0
    %v486 = vadd.f32 0.0, %v485
    %v487 = vpop.f32.mrb[0].mxu0
    %488 = vdwg.mxu0
    %v489 = vadd.f32 %v376, %v476
    %v490 = vadd.f32 %v381, %v481
    %v491 = vadd.f32 %v386, %v486
    %v492 = vld [vmem:[#allocation2 + $0x9] sm:$0xff]
    %v493 = vld [vmem:[#allocation2 + $0x11] sm:$0xff]
    %v494 = vld [vmem:[#allocation2 + $0x19] sm:$0xff]
    %v495 = vld [vmem:[#allocation3 + $0xc0] sm:$0xff]
    %v496 = vld [vmem:[#allocation3 + $0xc8] sm:$0xff]
    %v497 = vld [vmem:[#allocation3 + $0xd0] sm:$0xff]
    %v498 = vld [vmem:[#allocation3 + $0xd8] sm:$0xff]
    %v499 = vld [vmem:[#allocation3 + $0xe0] sm:$0xff]
    %v500 = vld [vmem:[#allocation3 + $0xe8] sm:$0xff]
    %v501 = vld [vmem:[#allocation3 + $0xf0] sm:$0xff]
    %v502 = vld [vmem:[#allocation3 + $0xf8] sm:$0xff]
    %v504 = vsel %vm183, %v492, 0
    %v507 = vsel %vm183, %v493, 0
    %v510 = vsel %vm183, %v494, 0
    %512 = vmatprep.subr.mxu0 0.0
    %513 = vmatpush1.msra.mxu0 %v495
    %514 = vmatprep.subr.mxu0 0.0
    %515 = vmatpush1.msra.mxu0 %v496
    %516 = vmatprep.subr.mxu0 0.0
    %517 = vmatpush1.msra.mxu0 %v497
    %518 = vmatprep.subr.mxu0 0.0
    %519 = vmatpush1.msra.mxu0 %v498
    %520 = vmatprep.subr.mxu0 0.0
    %521 = vmatpush1.msra.mxu0 %v499
    %522 = vmatprep.subr.mxu0 0.0
    %523 = vmatpush1.msra.mxu0 %v500
    %524 = vmatprep.subr.mxu0 0.0
    %525 = vmatpush1.msra.mxu0 %v501
    %526 = vmatprep.subr.mxu0 0.0
    %527 = vmatpush1.msra.mxu0 %v502
    %528 = vmatprep.subr.mxu0 0.0
    %529 = vmatpush1.msra.mxu0 0.0
    %530 = vmatprep.subr.mxu0 0.0
    %531 = vmatpush1.msra.mxu0 0.0
    %532 = vmatprep.subr.mxu0 0.0
    %533 = vmatpush1.msra.mxu0 0.0
    %534 = vmatprep.subr.mxu0 0.0
    %535 = vmatpush1.msra.mxu0 0.0
    %536 = vmatprep.subr.mxu0 0.0
    %537 = vmatpush1.msra.mxu0 0.0
    %538 = vmatprep.subr.mxu0 0.0
    %539 = vmatpush1.msra.mxu0 0.0
    %540 = vmatprep.subr.mxu0 0.0
    %541 = vmatpush1.msra.mxu0 0.0
    %542 = vmatprep.subr.mxu0 0.0
    %543 = vmatpush1.msra.mxu0 0.0
    %544 = vmatprep.subr.mxu0 0.0
    %545 = vmatpush1.msra.mxu0 0.0
    %546 = vmatprep.subr.mxu0 0.0
    %547 = vmatpush1.msra.mxu0 0.0
    %548 = vmatprep.subr.mxu0 0.0
    %549 = vmatpush1.msra.mxu0 0.0
    %550 = vmatprep.subr.mxu0 0.0
    %551 = vmatpush1.msra.mxu0 0.0
    %552 = vmatprep.subr.mxu0 0.0
    %553 = vmatpush1.msra.mxu0 0.0
    %554 = vmatprep.subr.mxu0 0.0
    %555 = vmatpush1.msra.mxu0 0.0
    %556 = vmatprep.subr.mxu0 0.0
    %557 = vmatpush1.msra.mxu0 0.0
    %558 = vmatprep.subr.mxu0 0.0
    %559 = vmatpush1.msra.mxu0 0.0
    %560 = vmatprep.subr.mxu0 0.0
    %561 = vmatpush1.msra.mxu0 0.0
    %562 = vmatprep.subr.mxu0 0.0
    %563 = vmatpush1.msra.mxu0 0.0
    %564 = vmatprep.subr.mxu0 0.0
    %565 = vmatpush1.msra.mxu0 0.0
    %566 = vmatprep.subr.mxu0 0.0
    %567 = vmatpush1.msra.mxu0 0.0
    %568 = vmatprep.subr.mxu0 0.0
    %569 = vmatpush1.msra.mxu0 0.0
    %570 = vmatprep.subr.mxu0 0.0
    %571 = vmatpush1.msra.mxu0 0.0
    %572 = vmatprep.subr.mxu0 0.0
    %573 = vmatpush1.msra.mxu0 0.0
    %574 = vmatprep.subr.mxu0 0.0
    %575 = vmatpush1.msra.mxu0 0.0
    %576 = vmatprep.mubr.f32.mxu0 0.0
    %577 = vmatmul.mubr.f32.gmra.mrb[0].mxu0 %v504
    %v578 = vpop.f32.mrb[0].mxu0
    %v579 = vadd.f32 0.0, %v578
    %v580 = vpop.f32.mrb[0].mxu0
    %581 = vmatprep.mubr.f32.mxu0 0.0
    %582 = vmatmul.mubr.f32.gmra.mrb[0].mxu0 %v507
    %v583 = vpop.f32.mrb[0].mxu0
    %v584 = vadd.f32 0.0, %v583
    %v585 = vpop.f32.mrb[0].mxu0
    %586 = vmatprep.mubr.f32.mxu0 0.0
    %587 = vmatmul.mubr.f32.gmra.mrb[0].mxu0 %v510
    %v588 = vpop.f32.mrb[0].mxu0
    %v589 = vadd.f32 0.0, %v588
    %v590 = vpop.f32.mrb[0].mxu0
    %591 = vdwg.mxu0
    %v592 = vadd.f32 %v489, %v579
    %v593 = vadd.f32 %v490, %v584
    %v594 = vadd.f32 %v491, %v589
    %v595 = vld [vmem:[#allocation2 + $0xa] sm:$0xff]
    %v596 = vld [vmem:[#allocation2 + $0x12] sm:$0xff]
    %v597 = vld [vmem:[#allocation2 + $0x1a] sm:$0xff]
    %v598 = vld [vmem:[#allocation3 + $0x100] sm:$0xff]
    %v599 = vld [vmem:[#allocation3 + $0x108] sm:$0xff]
    %v600 = vld [vmem:[#allocation3 + $0x110] sm:$0xff]
    %v601 = vld [vmem:[#allocation3 + $0x118] sm:$0xff]
    %v602 = vld [vmem:[#allocation3 + $0x120] sm:$0xff]
    %v603 = vld [vmem:[#allocation3 + $0x128] sm:$0xff]
    %v604 = vld [vmem:[#allocation3 + $0x130] sm:$0xff]
    %v605 = vld [vmem:[#allocation3 + $0x138] sm:$0xff]
    %v607 = vsel %vm183, %v595, 0
    %v610 = vsel %vm183, %v596, 0
    %v613 = vsel %vm183, %v597, 0
    %615 = vmatprep.subr.mxu0 0.0
    %616 = vmatpush1.msra.mxu0 %v598
    %617 = vmatprep.subr.mxu0 0.0
    %618 = vmatpush1.msra.mxu0 %v599
    %619 = vmatprep.subr.mxu0 0.0
    %620 = vmatpush1.msra.mxu0 %v600
    %621 = vmatprep.subr.mxu0 0.0
    %622 = vmatpush1.msra.mxu0 %v601
    %623 = vmatprep.subr.mxu0 0.0
    %624 = vmatpush1.msra.mxu0 %v602
    %625 = vmatprep.subr.mxu0 0.0
    %626 = vmatpush1.msra.mxu0 %v603
    %627 = vmatprep.subr.mxu0 0.0
    %628 = vmatpush1.msra.mxu0 %v604
    %629 = vmatprep.subr.mxu0 0.0
    %630 = vmatpush1.msra.mxu0 %v605
    %631 = vmatprep.subr.mxu0 0.0
    %632 = vmatpush1.msra.mxu0 0.0
    %633 = vmatprep.subr.mxu0 0.0
    %634 = vmatpush1.msra.mxu0 0.0
    %635 = vmatprep.subr.mxu0 0.0
    %636 = vmatpush1.msra.mxu0 0.0
    %637 = vmatprep.subr.mxu0 0.0
    %638 = vmatpush1.msra.mxu0 0.0
    %639 = vmatprep.subr.mxu0 0.0
    %640 = vmatpush1.msra.mxu0 0.0
    %641 = vmatprep.subr.mxu0 0.0
    %642 = vmatpush1.msra.mxu0 0.0
    %643 = vmatprep.subr.mxu0 0.0
    %644 = vmatpush1.msra.mxu0 0.0
    %645 = vmatprep.subr.mxu0 0.0
    %646 = vmatpush1.msra.mxu0 0.0
    %647 = vmatprep.subr.mxu0 0.0
    %648 = vmatpush1.msra.mxu0 0.0
    %649 = vmatprep.subr.mxu0 0.0
    %650 = vmatpush1.msra.mxu0 0.0
    %651 = vmatprep.subr.mxu0 0.0
    %652 = vmatpush1.msra.mxu0 0.0
    %653 = vmatprep.subr.mxu0 0.0
    %654 = vmatpush1.msra.mxu0 0.0
    %655 = vmatprep.subr.mxu0 0.0
    %656 = vmatpush1.msra.mxu0 0.0
    %657 = vmatprep.subr.mxu0 0.0
    %658 = vmatpush1.msra.mxu0 0.0
    %659 = vmatprep.subr.mxu0 0.0
    %660 = vmatpush1.msra.mxu0 0.0
    %661 = vmatprep.subr.mxu0 0.0
    %662 = vmatpush1.msra.mxu0 0.0
    %663 = vmatprep.subr.mxu0 0.0
    %664 = vmatpush1.msra.mxu0 0.0
    %665 = vmatprep.subr.mxu0 0.0
    %666 = vmatpush1.msra.mxu0 0.0
    %667 = vmatprep.subr.mxu0 0.0
    %668 = vmatpush1.msra.mxu0 0.0
    %669 = vmatprep.subr.mxu0 0.0
    %670 = vmatpush1.msra.mxu0 0.0
    %671 = vmatprep.subr.mxu0 0.0
    %672 = vmatpush1.msra.mxu0 0.0
    %673 = vmatprep.subr.mxu0 0.0
    %674 = vmatpush1.msra.mxu0 0.0
    %675 = vmatprep.subr.mxu0 0.0
    %676 = vmatpush1.msra.mxu0 0.0
    %677 = vmatprep.subr.mxu0 0.0
    %678 = vmatpush1.msra.mxu0 0.0
    %679 = vmatprep.mubr.f32.mxu0 0.0
    %680 = vmatmul.mubr.f32.gmra.mrb[0].mxu0 %v607
    %v681 = vpop.f32.mrb[0].mxu0
    %v682 = vadd.f32 0.0, %v681
    %v683 = vpop.f32.mrb[0].mxu0
    %684 = vmatprep.mubr.f32.mxu0 0.0
    %685 = vmatmul.mubr.f32.gmra.mrb[0].mxu0 %v610
    %v686 = vpop.f32.mrb[0].mxu0
    %v687 = vadd.f32 0.0, %v686
    %v688 = vpop.f32.mrb[0].mxu0
    %689 = vmatprep.mubr.f32.mxu0 0.0
    %690 = vmatmul.mubr.f32.gmra.mrb[0].mxu0 %v613
    %v691 = vpop.f32.mrb[0].mxu0
    %v692 = vadd.f32 0.0, %v691
    %v693 = vpop.f32.mrb[0].mxu0
    %694 = vdwg.mxu0
    %v695 = vadd.f32 %v592, %v682
    %v696 = vadd.f32 %v593, %v687
    %v697 = vadd.f32 %v594, %v692
    %v698 = vld [vmem:[%s6] sm:$0x1]
    %v700 = vlaneseq
    %v701 = vshrl.u32 %v700, 7
    %v702 = vsub.s32 0, %v701
    %v703 = vrot.slane %v698, %v702
    %v705 = vadd.f32 %v695, %v703
    %v706 = vadd.f32 %v696, %v703
    %v707 = vadd.f32 %v697, %v703
    %v708 = vmax.f32 %v705, 0.0
    %v709 = vmax.f32 %v706, 0.0
    %v710 = vmax.f32 %v707, 0.0
    %v711 = vld [vmem:[%s2] sm:$0x3]
    %vm712 = vcmask 195584
    %v714 = vsel %vm712, %v711, 0
    %716 = vmatprep.subr.mxu0 0.0
    %717 = vmatpush1.msra.mxu0 %v708
    %718 = vmatprep.subr.mxu0 0.0
    %719 = vmatpush1.msra.mxu0 %v709
    %720 = vmatprep.subr.mxu0 0.0
    %721 = vmatpush1.msra.mxu0 %v710
    %722 = vmatprep.subr.mxu0 0.0
    %723 = vmatpush1.msra.mxu0 0.0
    %724 = vmatprep.subr.mxu0 0.0
    %725 = vmatpush1.msra.mxu0 0.0
    %726 = vmatprep.subr.mxu0 0.0
    %727 = vmatpush1.msra.mxu0 0.0
    %728 = vmatprep.subr.mxu0 0.0
    %729 = vmatpush1.msra.mxu0 0.0
    %730 = vmatprep.subr.mxu0 0.0
    %731 = vmatpush1.msra.mxu0 0.0
    %732 = vmatprep.subr.mxu0 0.0
    %733 = vmatpush1.msra.mxu0 0.0
    %734 = vmatprep.subr.mxu0 0.0
    %735 = vmatpush1.msra.mxu0 0.0
    %736 = vmatprep.subr.mxu0 0.0
    %737 = vmatpush1.msra.mxu0 0.0
    %738 = vmatprep.subr.mxu0 0.0
    %739 = vmatpush1.msra.mxu0 0.0
    %740 = vmatprep.subr.mxu0 0.0
    %741 = vmatpush1.msra.mxu0 0.0
    %742 = vmatprep.subr.mxu0 0.0
    %743 = vmatpush1.msra.mxu0 0.0
    %744 = vmatprep.subr.mxu0 0.0
    %745 = vmatpush1.msra.mxu0 0.0
    %746 = vmatprep.subr.mxu0 0.0
    %747 = vmatpush1.msra.mxu0 0.0
    %748 = vmatprep.subr.mxu0 0.0
    %749 = vmatpush1.msra.mxu0 0.0
    %750 = vmatprep.subr.mxu0 0.0
    %751 = vmatpush1.msra.mxu0 0.0
    %752 = vmatprep.subr.mxu0 0.0
    %753 = vmatpush1.msra.mxu0 0.0
    %754 = vmatprep.subr.mxu0 0.0
    %755 = vmatpush1.msra.mxu0 0.0
    %756 = vmatprep.subr.mxu0 0.0
    %757 = vmatpush1.msra.mxu0 0.0
    %758 = vmatprep.subr.mxu0 0.0
    %759 = vmatpush1.msra.mxu0 0.0
    %760 = vmatprep.subr.mxu0 0.0
    %761 = vmatpush1.msra.mxu0 0.0
    %762 = vmatprep.subr.mxu0 0.0
    %763 = vmatpush1.msra.mxu0 0.0
    %764 = vmatprep.subr.mxu0 0.0
    %765 = vmatpush1.msra.mxu0 0.0
    %766 = vmatprep.subr.mxu0 0.0
    %767 = vmatpush1.msra.mxu0 0.0
    %768 = vmatprep.subr.mxu0 0.0
    %769 = vmatpush1.msra.mxu0 0.0
    %770 = vmatprep.subr.mxu0 0.0
    %771 = vmatpush1.msra.mxu0 0.0
    %772 = vmatprep.subr.mxu0 0.0
    %773 = vmatpush1.msra.mxu0 0.0
    %774 = vmatprep.subr.mxu0 0.0
    %775 = vmatpush1.msra.mxu0 0.0
    %776 = vmatprep.subr.mxu0 0.0
    %777 = vmatpush1.msra.mxu0 0.0
    %778 = vmatprep.subr.mxu0 0.0
    %779 = vmatpush1.msra.mxu0 0.0
    %780 = vmatprep.mubr.f32.mxu0 0.0
    %781 = vmatmul.mubr.f32.gmra.mrb[0].mxu0 %v714
    %v782 = vpop.f32.mrb[0].mxu0
    %v783 = vadd.f32 0.0, %v782
    %v784 = vpop.f32.mrb[0].mxu0
    %785 = vdwg.mxu0
    %v786 = vld [vmem:[%s7] sm:$0xff]
    %v787 = vld [vmem:[%s7 + $0x8] sm:$0xff]
    %v788 = vld [vmem:[%s7 + $0x10] sm:$0xff]
    %v789 = vld [vmem:[%s7 + $0x18] sm:$0xff]
    %v790 = vld [vmem:[%s7 + $0x20] sm:$0xff]
    %v791 = vld [vmem:[%s7 + $0x28] sm:$0xff]
    %v792 = vld [vmem:[%s7 + $0x30] sm:$0xff]
    %v793 = vld [vmem:[%s7 + $0x38] sm:$0xff]
    %v794 = vld [vmem:[%s7 + $0x40] sm:$0xff]
    %v795 = vld [vmem:[%s7 + $0x48] sm:$0xff]
    %v796 = vld [vmem:[%s7 + $0x50] sm:$0xff]
    %v797 = vld [vmem:[%s7 + $0x58] sm:$0xff]
    %v798 = vld [vmem:[%s7 + $0x60] sm:$0xff]
    %v799 = vld [vmem:[%s7 + $0x68] sm:$0xff]
    %v800 = vld [vmem:[%s7 + $0x70] sm:$0xff]
    %v801 = vld [vmem:[%s7 + $0x78] sm:$0xff]
    %v802 = vld [vmem:[%s8] sm:$0x1]
    %v804 = vlaneseq
    %v805 = vshrl.u32 %v804, 7
    %v806 = vsub.s32 0, %v805
    %v807 = vrot.slane %v802, %v806
    %809 = vmatprep.subr.mxu0 0.0
    %810 = vmatpush1.msra.mxu0 %v786
    %811 = vmatprep.subr.mxu0 0.0
    %812 = vmatpush1.msra.mxu0 %v787
    %813 = vmatprep.subr.mxu0 0.0
    %814 = vmatpush1.msra.mxu0 %v788
    %815 = vmatprep.subr.mxu0 0.0
    %816 = vmatpush1.msra.mxu0 %v789
    %817 = vmatprep.subr.mxu0 0.0
    %818 = vmatpush1.msra.mxu0 %v790
    %819 = vmatprep.subr.mxu0 0.0
    %820 = vmatpush1.msra.mxu0 %v791
    %821 = vmatprep.subr.mxu0 0.0
    %822 = vmatpush1.msra.mxu0 %v792
    %823 = vmatprep.subr.mxu0 0.0
    %824 = vmatpush1.msra.mxu0 %v793
    %825 = vmatprep.subr.mxu0 0.0
    %826 = vmatpush1.msra.mxu0 %v794
    %827 = vmatprep.subr.mxu0 0.0
    %828 = vmatpush1.msra.mxu0 %v795
    %829 = vmatprep.subr.mxu0 0.0
    %830 = vmatpush1.msra.mxu0 %v796
    %831 = vmatprep.subr.mxu0 0.0
    %832 = vmatpush1.msra.mxu0 %v797
    %833 = vmatprep.subr.mxu0 0.0
    %834 = vmatpush1.msra.mxu0 %v798
    %835 = vmatprep.subr.mxu0 0.0
    %836 = vmatpush1.msra.mxu0 %v799
    %837 = vmatprep.subr.mxu0 0.0
    %838 = vmatpush1.msra.mxu0 %v800
    %839 = vmatprep.subr.mxu0 0.0
    %840 = vmatpush1.msra.mxu0 %v801
    %841 = vmatprep.subr.mxu0 0.0
    %842 = vmatpush1.msra.mxu0 0.0
    %843 = vmatprep.subr.mxu0 0.0
    %844 = vmatpush1.msra.mxu0 0.0
    %845 = vmatprep.subr.mxu0 0.0
    %846 = vmatpush1.msra.mxu0 0.0
    %847 = vmatprep.subr.mxu0 0.0
    %848 = vmatpush1.msra.mxu0 0.0
    %849 = vmatprep.subr.mxu0 0.0
    %850 = vmatpush1.msra.mxu0 0.0
    %851 = vmatprep.subr.mxu0 0.0
    %852 = vmatpush1.msra.mxu0 0.0
    %853 = vmatprep.subr.mxu0 0.0
    %854 = vmatpush1.msra.mxu0 0.0
    %855 = vmatprep.subr.mxu0 0.0
    %856 = vmatpush1.msra.mxu0 0.0
    %857 = vmatprep.subr.mxu0 0.0
    %858 = vmatpush1.msra.mxu0 0.0
    %859 = vmatprep.subr.mxu0 0.0
    %860 = vmatpush1.msra.mxu0 0.0
    %861 = vmatprep.subr.mxu0 0.0
    %862 = vmatpush1.msra.mxu0 0.0
    %863 = vmatprep.subr.mxu0 0.0
    %864 = vmatpush1.msra.mxu0 0.0
    %865 = vmatprep.subr.mxu0 0.0
    %866 = vmatpush1.msra.mxu0 0.0
    %867 = vmatprep.subr.mxu0 0.0
    %868 = vmatpush1.msra.mxu0 0.0
    %869 = vmatprep.subr.mxu0 0.0
    %870 = vmatpush1.msra.mxu0 0.0
    %871 = vmatprep.subr.mxu0 0.0
    %872 = vmatpush1.msra.mxu0 0.0
    %873 = vmatprep.mubr.f32.mxu0 0.0
    %874 = vmatmul.mubr.f32.gmra.mrb[0].mxu0 %v783
    %v875 = vpop.f32.mrb[0].mxu0
    %v876 = vadd.f32 %v807, %v875
    %v877 = vpop.f32.mrb[0].mxu0
    %878 = vdwg.mxu0
    %v879 = vmax.f32 %v876, 0.0
    %v880 = vld [vmem:[%s9] sm:$0xff]
    %v881 = vld [vmem:[%s9 + $0x8] sm:$0xff]
    %v882 = vld [vmem:[%s9 + $0x10] sm:$0xff]
    %v883 = vld [vmem:[%s9 + $0x18] sm:$0xff]
    %v884 = vld [vmem:[%s9 + $0x20] sm:$0xff]
    %v885 = vld [vmem:[%s9 + $0x28] sm:$0xff]
    %v886 = vld [vmem:[%s9 + $0x30] sm:$0xff]
    %v887 = vld [vmem:[%s9 + $0x38] sm:$0xff]
    %v888 = vld [vmem:[%s10] sm:$0x1]
    %v890 = vlaneseq
    %v891 = vshrl.u32 %v890, 7
    %v892 = vsub.s32 0, %v891
    %v893 = vrot.slane %v888, %v892
    %v896 = vsel %vm183, %v879, 0
    %898 = vmatprep.subr.mxu0 0.0
    %899 = vmatpush1.msra.mxu0 %v880
    %900 = vmatprep.subr.mxu0 0.0
    %901 = vmatpush1.msra.mxu0 %v881
    %902 = vmatprep.subr.mxu0 0.0
    %903 = vmatpush1.msra.mxu0 %v882
    %904 = vmatprep.subr.mxu0 0.0
    %905 = vmatpush1.msra.mxu0 %v883
    %906 = vmatprep.subr.mxu0 0.0
    %907 = vmatpush1.msra.mxu0 %v884
    %908 = vmatprep.subr.mxu0 0.0
    %909 = vmatpush1.msra.mxu0 %v885
    %910 = vmatprep.subr.mxu0 0.0
    %911 = vmatpush1.msra.mxu0 %v886
    %912 = vmatprep.subr.mxu0 0.0
    %913 = vmatpush1.msra.mxu0 %v887
    %914 = vmatprep.subr.mxu0 0.0
    %915 = vmatpush1.msra.mxu0 0.0
    %916 = vmatprep.subr.mxu0 0.0
    %917 = vmatpush1.msra.mxu0 0.0
    %918 = vmatprep.subr.mxu0 0.0
    %919 = vmatpush1.msra.mxu0 0.0
    %920 = vmatprep.subr.mxu0 0.0
    %921 = vmatpush1.msra.mxu0 0.0
    %922 = vmatprep.subr.mxu0 0.0
    %923 = vmatpush1.msra.mxu0 0.0
    %924 = vmatprep.subr.mxu0 0.0
    %925 = vmatpush1.msra.mxu0 0.0
    %926 = vmatprep.subr.mxu0 0.0
    %927 = vmatpush1.msra.mxu0 0.0
    %928 = vmatprep.subr.mxu0 0.0
    %929 = vmatpush1.msra.mxu0 0.0
    %930 = vmatprep.subr.mxu0 0.0
    %931 = vmatpush1.msra.mxu0 0.0
    %932 = vmatprep.subr.mxu0 0.0
    %933 = vmatpush1.msra.mxu0 0.0
    %934 = vmatprep.subr.mxu0 0.0
    %935 = vmatpush1.msra.mxu0 0.0
    %936 = vmatprep.subr.mxu0 0.0
    %937 = vmatpush1.msra.mxu0 0.0
    %938 = vmatprep.subr.mxu0 0.0
    %939 = vmatpush1.msra.mxu0 0.0
    %940 = vmatprep.subr.mxu0 0.0
    %941 = vmatpush1.msra.mxu0 0.0
    %942 = vmatprep.subr.mxu0 0.0
    %943 = vmatpush1.msra.mxu0 0.0
    %944 = vmatprep.subr.mxu0 0.0
    %945 = vmatpush1.msra.mxu0 0.0
    %946 = vmatprep.subr.mxu0 0.0
    %947 = vmatpush1.msra.mxu0 0.0
    %948 = vmatprep.subr.mxu0 0.0
    %949 = vmatpush1.msra.mxu0 0.0
    %950 = vmatprep.subr.mxu0 0.0
    %951 = vmatpush1.msra.mxu0 0.0
    %952 = vmatprep.subr.mxu0 0.0
    %953 = vmatpush1.msra.mxu0 0.0
    %954 = vmatprep.subr.mxu0 0.0
    %955 = vmatpush1.msra.mxu0 0.0
    %956 = vmatprep.subr.mxu0 0.0
    %957 = vmatpush1.msra.mxu0 0.0
    %958 = vmatprep.subr.mxu0 0.0
    %959 = vmatpush1.msra.mxu0 0.0
    %960 = vmatprep.subr.mxu0 0.0
    %961 = vmatpush1.msra.mxu0 0.0
    %962 = vmatprep.mubr.f32.mxu0 0.0
    %963 = vmatmul.mubr.f32.gmra.mrb[0].mxu0 %v896
    %v964 = vpop.f32.mrb[0].mxu0
    %v965 = vadd.f32 %v893, %v964
    %v966 = vpop.f32.mrb[0].mxu0
    %967 = vdwg.mxu0
    %v968 = vmul.f32 %v965, %v965
    %vm969 = vcmask 517120
    %v970 = vsel %vm969, %v968, 0.0
    %971 = vadd.xlane.f32.xlu0 %v970
    %v972 = vpop.xlane.xlu0 %971
    %v973 = vmax.f32 %v972, 1e-24
    %v974 = vrsqrt.pop %v973
    %v975 = vmul.f32 %v965, %v974
    %976 = vst.msk [vmem:[#allocation6] sm:$0x3] %vm969, %v975
    // Predicated region
    $region50: #{tpu_custom_call.1} parent=1 // pred_check
      _
    $region51: #{tpu_custom_call.1} parent=1 // pred_check_branch
      %978 = sbr.rel (0) target = $region53
    $region52: #{tpu_custom_call.1} parent=1 // pred_region
      %s980 = ssub.s32 32, 32
      %981 = vsyncadd [#allocation5], %s980
      %s983 = sshll.u32 [#allocation6], 4
      %s984 = int_to_ptr.vmem [resolvable:$true] %s983
      %986 = dma.vmem_to_hbm [thread:$0]  %s984, 32, %s11, [#allocation5]
    $region53: #{tpu_custom_call.1} parent=1 // pred_fallthru
      _
    // Predicated region
    $region54: #{tpu_custom_call.1} parent=1 // pred_check
      _
    $region55: #{tpu_custom_call.1} parent=1 // pred_check_branch
      %988 = sbr.rel (0) target = $region57
    $region56: #{tpu_custom_call.1} parent=1 // pred_region
      %989 = dma.done [#allocation5], 32
    $region57: #{tpu_custom_call.1} parent=1 // pred_fallthru
      _
    %990 = vsyncpa [#allocation4], 1
    %991 = vsyncpa [#allocation5], 1

</llo_original>
